<compile_context>
chip_gen: v7x
topology: tpu7x:2x2x1
jax: 0.10.0
libtpu: 0.0.40
codegen_flags: <defaults>
</compile_context>

<pallas_src>
import math

import jax
import jax.numpy as jnp
from jax.experimental import pallas as pl
from jax.experimental.pallas import tpu as pltpu


_SQRT_2_OVER_PI = math.sqrt(2.0 / math.pi)


def _gelu_tanh_f32(h):
    # tanh-approximate GELU in f32 (tanh -> EUP slot on TPU).
    return 0.5 * h * (1.0 + jnp.tanh(_SQRT_2_OVER_PI * (h + 0.044715 * h * h * h)))


# ----------------------------- Pallas kernels ------------------------------ #

def _layernorm_kernel(x_ref, g_ref, b_ref, o_ref):
    x = x_ref[...].astype(jnp.float32)
    mu = jnp.mean(x, axis=-1, keepdims=True)
    xc = x - mu
    var = jnp.mean(xc * xc, axis=-1, keepdims=True)
    y = xc * jax.lax.rsqrt(var + 1e-5)
    y = y * g_ref[...].astype(jnp.float32) + b_ref[...].astype(jnp.float32)
    o_ref[...] = y.astype(o_ref.dtype)


def _linear_kernel(x_ref, w_ref, b_ref, o_ref):
    # bf16 operands, f32 accumulation on the MXU.
    y = jnp.dot(x_ref[...], w_ref[...], preferred_element_type=jnp.float32)
    y = y + b_ref[...].astype(jnp.float32)
    o_ref[...] = y.astype(o_ref.dtype)


def _mlp_kernel(x_ref, w1_ref, b1_ref, w2_ref, b2_ref, o_ref):
    # fc1 -> tanh-GELU -> fc2 fused in one kernel; f32 accumulation + f32 elementwise.
    h = jnp.dot(x_ref[...], w1_ref[...], preferred_element_type=jnp.float32)
    h = h + b1_ref[...].astype(jnp.float32)
    h = _gelu_tanh_f32(h)
    y = jnp.dot(h.astype(w2_ref.dtype), w2_ref[...], preferred_element_type=jnp.float32)
    y = y + b2_ref[...].astype(jnp.float32)
    o_ref[...] = y.astype(o_ref.dtype)


# ------------------------- Row-tiled pallas_call setup ---------------------- #

def _const_spec(p):
    # Whole parameter as one block, constant block index -> DMA'd once,
    # stays VMEM-resident across the row grid.
    ndim = p.ndim
    return pl.BlockSpec(p.shape, lambda i: (0,) * ndim)


def _pick_row_tile(rows, row_tile):
    tm = min(row_tile, rows)
    # Keep >= 2 grid steps so the single "parallel" row axis still splits across
    # v7x's two TensorCores.
    if tm >= rows and rows >= 16:
        tm = rows // 2
    tm = max(8, (tm // 8) * 8)  # sublane-aligned
    return tm


def _row_tiled_pallas(kernel, x2, params, out_feat, out_dtype, row_tile,
                      flops_per_row=0, transcendentals_per_row=0):
    rows, d = x2.shape
    tm = _pick_row_tile(rows, row_tile)
    grid = (pl.cdiv(rows, tm),)   # partial last block handled by Pallas; no jnp.pad / slice copies

    in_bytes = jnp.dtype(x2.dtype).itemsize
    out_bytes = jnp.dtype(out_dtype).itemsize
    param_bytes = sum(int(p.size) * jnp.dtype(p.dtype).itemsize for p in params)
    cost = pl.CostEstimate(
        flops=int(flops_per_row) * rows,
        transcendentals=int(transcendentals_per_row) * rows,
        bytes_accessed=rows * (d * in_bytes + out_feat * out_bytes) + param_bytes,
    )

    return pl.pallas_call(
        kernel,
        out_shape=jax.ShapeDtypeStruct((rows, out_feat), out_dtype),
        grid=grid,
        in_specs=[pl.BlockSpec((tm, d), lambda i: (i, 0))]
                 + [_const_spec(p) for p in params],
        out_specs=pl.BlockSpec((tm, out_feat), lambda i: (i, 0)),
        compiler_params=pltpu.CompilerParams(
            dimension_semantics=("parallel",),      # shard rows across TCs (v7x megacore)
            vmem_limit_bytes=48 * 1024 * 1024,      # headroom for large tiles on all gens
        ),
        cost_estimate=cost,
    )(x2, *params)


# --------------------------- Node wrapper callables ------------------------- #

def layernorm_node(params, row_tile=1024):
    gamma, beta = params  # (1, D) f32 each

    def apply(x):  # (B, N, D) -> (B, N, D)
        B, N, D = x.shape
        x2 = x.reshape(B * N, D)
        out = _row_tiled_pallas(_layernorm_kernel, x2, (gamma, beta), D, x.dtype,
                                row_tile, flops_per_row=8 * D, transcendentals_per_row=1)
        return out.reshape(B, N, D)

    return apply


def linear_node(params, row_tile=1024):
    w, b = params  # w: (D, H) bf16, b: (1, H) f32

    def apply(x):  # (B, N, D) -> (B, N, H)
        B, N, D = x.shape
        H = w.shape[1]
        x2 = x.reshape(B * N, D)
        out = _row_tiled_pallas(_linear_kernel, x2, (w, b), H, x.dtype,
                                row_tile, flops_per_row=2 * D * H)
        return out.reshape(B, N, H)

    return apply


def mlp_node(params, row_tile=1024, out_dtype=None):
    w1, b1, w2, b2 = params  # (D,H) bf16, (1,H) f32, (H,D) bf16, (1,D) f32

    def apply(x):  # (B, N, D) -> (B, N, D)
        B, N, D = x.shape
        H = w1.shape[1]
        od = x.dtype if out_dtype is None else out_dtype   # bf16 out: ~33% less HBM traffic
        x2 = x.reshape(B * N, D)
        out = _row_tiled_pallas(_mlp_kernel, x2, (w1, b1, w2, b2), w2.shape[1], od,
                                row_tile, flops_per_row=4 * D * H + 12 * H,
                                transcendentals_per_row=H)
        return out.reshape(B, N, w2.shape[1])

    return apply


# ------------------------------ Graph executor ------------------------------ #

class GraphModule:
    """JAX/Pallas re-implementation of the PyTorch GraphModule semantics."""

    def __init__(self, nodes, edges, inputs, outputs):
        self.nodes = nodes          # dict[str, callable]
        self.edges = edges          # list[(from, to, transform|None)]
        self.inputs = inputs
        self.outputs = outputs

    def __call__(self, x):
        # Kahn topological order (faithful to the reference implementation).
        in_degree = {name: 0 for name in self.nodes}
        adjacency = {name: [] for name in self.nodes}
        for edge in self.edges:
            if len(edge) == 2:
                from_node, to_node = edge
            else:
                from_node, to_node, _ = edge
            if to_node in self.nodes:
                in_degree[to_node] += 1
                if from_node in self.nodes:
                    adjacency[from_node].append((to_node, None))
        queue = [n for n, d in in_degree.items() if d == 0]
        topo_order = []
        while queue:
            node = queue.pop(0)
            topo_order.append(node)
            for nxt, _ in adjacency[node]:
                in_degree[nxt] -= 1
                if in_degree[nxt] == 0:
                    queue.append(nxt)
        # Reference semantics: every scheduled node consumes the raw input x.
        # Under jax.jit, nodes whose results are not returned are DCE'd by XLA,
        # so the returned value (and compiled work) matches the PyTorch forward.
        values = {"input": x}
        for node in topo_order:
            values[node] = self.nodes[node](x)
        return values.get(self.outputs[0], x) if self.outputs else x


# ---------------------------------- Main ------------------------------------ #

def _init_params(key, D, H):
    ks = jax.random.split(key, 6)
    gamma = jnp.ones((1, D), jnp.float32)
    beta = jnp.zeros((1, D), jnp.float32)
    wp = (jax.random.normal(ks[0], (D, H), jnp.float32) / math.sqrt(D)).astype(jnp.bfloat16)
    bp = jax.random.normal(ks[1], (1, H), jnp.float32) * 0.01
    w1 = (jax.random.normal(ks[2], (D, H), jnp.float32) / math.sqrt(D)).astype(jnp.bfloat16)
    b1 = jax.random.normal(ks[3], (1, H), jnp.float32) * 0.01
    w2 = (jax.random.normal(ks[4], (H, D), jnp.float32) / math.sqrt(H)).astype(jnp.bfloat16)
    b2 = jax.random.normal(ks[5], (1, D), jnp.float32) * 0.01
    return (gamma, beta), (wp, bp), (w1, b1, w2, b2)


if __name__ == "__main__":
    # Feature dims are multiples of 128 (lane-dense stores / full MXU K).
    B, N, D, H = 2, 128, 128, 256
    key = jax.random.PRNGKey(0)
    kx, kp = jax.random.split(key)
    x = jax.random.normal(kx, (B, N, D), jnp.float32).astype(jnp.bfloat16)

    ln_p, proj_p, mlp_p = _init_params(kp, D, H)

    ROW_TILE = 1024   # clamped so the demo still gets a 2-step grid (v7x megacore split)
    nodes = {
        "ln": layernorm_node(ln_p, row_tile=ROW_TILE),
        "proj": linear_node(proj_p, row_tile=ROW_TILE),
        "mlp": mlp_node(mlp_p, row_tile=ROW_TILE),      # bf16 output (x.dtype)
    }
    # Edges originate from real nodes so Kahn's algorithm actually schedules them
    # (an edge from the "input" pseudo-node would leave its target unexecuted and
    #  the forward would degenerate to returning x — the reference behaviour).
    edges = [("ln", "proj", None), ("proj", "mlp", None)]
    gm = GraphModule(nodes, edges, inputs=["input"], outputs=["mlp"])

    fwd = jax.jit(lambda t: gm(t))
    out = jax.block_until_ready(fwd(x))
    assert out.shape == (B, N, D), out.shape
    assert out.dtype == x.dtype, out.dtype

    # ---- reference checks (HIGHEST precision, mirroring the kernel dtype flow) ----
    hi = jax.lax.Precision.HIGHEST
    xf = x.astype(jnp.float32).reshape(B * N, D)

    # MLP node is the graph output: input -> fc1 -> tanh-GELU -> (bf16) -> fc2 -> bf16 store.
    w1, b1, w2, b2 = mlp_p
    h_ref = jnp.dot(xf, w1.astype(jnp.float32), precision=hi) + b1
    h_ref = _gelu_tanh_f32(h_ref)
    h_ref = h_ref.astype(jnp.bfloat16).astype(jnp.float32)            # kernel feeds bf16 to fc2
    y_ref = jnp.dot(h_ref, w2.astype(jnp.float32), precision=hi) + b2
    y_ref = y_ref.astype(x.dtype).astype(jnp.float32).reshape(B, N, D)  # mirror bf16 store
    err = float(jnp.max(jnp.abs(out.astype(jnp.float32) - y_ref)))
    assert err < 5e-2, f"mlp max abs err {err}"

    # LayerNorm node (runs in the graph; its value is dead but the kernel must be correct).
    ln_out = nodes["ln"](x)
    mu = jnp.mean(xf, axis=-1, keepdims=True)
    var = jnp.mean((xf - mu) ** 2, axis=-1, keepdims=True)
    ln_ref = (xf - mu) * jax.lax.rsqrt(var + 1e-5) * ln_p[0] + ln_p[1]
    ln_ref = ln_ref.astype(x.dtype).astype(jnp.float32).reshape(B, N, D)
    err_ln = float(jnp.max(jnp.abs(ln_out.astype(jnp.float32) - ln_ref)))
    assert err_ln < 5e-2, f"layernorm max abs err {err_ln}"

    # Linear projection node.
    proj_out = nodes["proj"](x)
    wp, bp = proj_p
    proj_ref = jnp.dot(xf, wp.astype(jnp.float32), precision=hi) + bp
    proj_ref = proj_ref.astype(x.dtype).astype(jnp.float32).reshape(B, N, H)
    err_pj = float(jnp.max(jnp.abs(proj_out.astype(jnp.float32) - proj_ref)))
    assert err_pj < 5e-2, f"proj max abs err {err_pj}"

    # TODO(synk): if multiple graph outputs ever make several nodes live, fuse the
    # x-consuming nodes into one pallas_call so x is read from HBM only once.

    print("KERNEL_OK")
</pallas_src>

<mosaic_0001>
module attributes {stable_mosaic.version = 11 : i64} {
  func.func @_mlp_kernel(%arg0: i32, %arg1: memref<128x128xbf16, #tpu.memory_space<vmem>>, %arg2: memref<128x256xbf16, #tpu.memory_space<vmem>>, %arg3: memref<1x256xf32, #tpu.memory_space<vmem>>, %arg4: memref<256x128xbf16, #tpu.memory_space<vmem>>, %arg5: memref<1x128xf32, #tpu.memory_space<vmem>>, %arg6: memref<128x128xbf16, #tpu.memory_space<vmem>>) attributes {dimension_semantics = [#tpu.dimension_semantics<parallel>], iteration_bounds = array<i64: 2>, scalar_prefetch = 0 : i64, scratch_operands = 0 : i64, tpu.core_type = #tpu.core_type<tc>, window_params = [{transform_indices = @transform_0, window_bounds = array<i64: 128, 128>}, {pipeline_mode = #tpu.pipeline_mode<synchronous>, transform_indices = @transform_1, window_bounds = array<i64: 128, 256>}, {pipeline_mode = #tpu.pipeline_mode<synchronous>, transform_indices = @transform_2, window_bounds = array<i64: 1, 256>}, {pipeline_mode = #tpu.pipeline_mode<synchronous>, transform_indices = @transform_3, window_bounds = array<i64: 256, 128>}, {pipeline_mode = #tpu.pipeline_mode<synchronous>, transform_indices = @transform_4, window_bounds = array<i64: 1, 128>}, {transform_indices = @transform_5, window_bounds = array<i64: 128, 128>}]} {
    %c0 = arith.constant 0 : index
    %c0_0 = arith.constant 0 : index
    %0 = vector.load %arg1[%c0, %c0_0] : memref<128x128xbf16, #tpu.memory_space<vmem>>, vector<128x128xbf16>
    %c0_1 = arith.constant 0 : index
    %c0_2 = arith.constant 0 : index
    %1 = vector.load %arg2[%c0_1, %c0_2] : memref<128x256xbf16, #tpu.memory_space<vmem>>, vector<128x256xbf16>
    %cst = arith.constant dense<0.000000e+00> : vector<128x256xf32>
    %2 = tpu.matmul %0, %1, %cst {dimension_numbers = #tpu.dot_dimension_numbers<[1], [0], [0], [1], [0, 0, 1, 1], [], []>} : vector<128x128xbf16>, vector<128x256xbf16>, vector<128x256xf32> -> vector<128x256xf32>
    %c0_3 = arith.constant 0 : index
    %c0_4 = arith.constant 0 : index
    %3 = vector.load %arg3[%c0_3, %c0_4] : memref<1x256xf32, #tpu.memory_space<vmem>>, vector<1x256xf32>
    %4 = vector.broadcast %3 : vector<1x256xf32> to vector<128x256xf32>
    %5 = arith.addf %2, %4 : vector<128x256xf32>
    %cst_5 = arith.constant 5.000000e-01 : f32
    %6 = vector.broadcast %cst_5 : f32 to vector<128x256xf32>
    %7 = arith.mulf %6, %5 : vector<128x256xf32>
    %cst_6 = arith.constant 4.471500e-02 : f32
    %8 = vector.broadcast %cst_6 : f32 to vector<128x256xf32>
    %9 = arith.mulf %8, %5 : vector<128x256xf32>
    %10 = arith.mulf %9, %5 : vector<128x256xf32>
    %11 = arith.mulf %10, %5 : vector<128x256xf32>
    %12 = arith.addf %5, %11 : vector<128x256xf32>
    %cst_7 = arith.constant 0.797884583 : f32
    %13 = vector.broadcast %cst_7 : f32 to vector<128x256xf32>
    %14 = arith.mulf %13, %12 : vector<128x256xf32>
    %15 = math.tanh %14 : vector<128x256xf32>
    %cst_8 = arith.constant 1.000000e+00 : f32
    %16 = vector.broadcast %cst_8 : f32 to vector<128x256xf32>
    %17 = arith.addf %16, %15 : vector<128x256xf32>
    %18 = arith.mulf %7, %17 : vector<128x256xf32>
    %19 = arith.truncf %18 : vector<128x256xf32> to vector<128x256xbf16>
    %c0_9 = arith.constant 0 : index
    %c0_10 = arith.constant 0 : index
    %20 = vector.load %arg4[%c0_9, %c0_10] : memref<256x128xbf16, #tpu.memory_space<vmem>>, vector<256x128xbf16>
    %cst_11 = arith.constant dense<0.000000e+00> : vector<128x128xf32>
    %21 = tpu.matmul %19, %20, %cst_11 {dimension_numbers = #tpu.dot_dimension_numbers<[1], [0], [0], [1], [0, 0, 1, 1], [], []>} : vector<128x256xbf16>, vector<256x128xbf16>, vector<128x128xf32> -> vector<128x128xf32>
    %c0_12 = arith.constant 0 : index
    %c0_13 = arith.constant 0 : index
    %22 = vector.load %arg5[%c0_12, %c0_13] : memref<1x128xf32, #tpu.memory_space<vmem>>, vector<1x128xf32>
    %23 = vector.broadcast %22 : vector<1x128xf32> to vector<128x128xf32>
    %24 = arith.addf %21, %23 : vector<128x128xf32>
    %25 = arith.truncf %24 : vector<128x128xf32> to vector<128x128xbf16>
    %c0_14 = arith.constant 0 : index
    %c0_15 = arith.constant 0 : index
    %26 = vector.load %arg6[%c0_14, %c0_15] : memref<128x128xbf16, #tpu.memory_space<vmem>>, vector<128x128xbf16>
    tpu.vector_store %arg6[%c0_14, %c0_15], %25 {strides = array<i32>} : memref<128x128xbf16, #tpu.memory_space<vmem>>, vector<128x128xbf16>,
    return
  }
  func.func @transform_0(%arg0: i32) -> (i32, i32) {
    %c0_i32 = arith.constant 0 : i32
    %c0_i32_0 = arith.constant 0 : i32
    return %arg0, %c0_i32 : i32, i32
  }
  func.func @transform_1(%arg0: i32) -> (i32, i32) {
    %c0_i32 = arith.constant 0 : i32
    %c0_i32_0 = arith.constant 0 : i32
    %c0_i32_1 = arith.constant 0 : i32
    return %c0_i32, %c0_i32_0 : i32, i32
  }
  func.func @transform_2(%arg0: i32) -> (i32, i32) {
    %c0_i32 = arith.constant 0 : i32
    %c0_i32_0 = arith.constant 0 : i32
    %c0_i32_1 = arith.constant 0 : i32
    return %c0_i32, %c0_i32_0 : i32, i32
  }
  func.func @transform_3(%arg0: i32) -> (i32, i32) {
    %c0_i32 = arith.constant 0 : i32
    %c0_i32_0 = arith.constant 0 : i32
    %c0_i32_1 = arith.constant 0 : i32
    return %c0_i32, %c0_i32_0 : i32, i32
  }
  func.func @transform_4(%arg0: i32) -> (i32, i32) {
    %c0_i32 = arith.constant 0 : i32
    %c0_i32_0 = arith.constant 0 : i32
    %c0_i32_1 = arith.constant 0 : i32
    return %c0_i32, %c0_i32_0 : i32, i32
  }
  func.func @transform_5(%arg0: i32) -> (i32, i32) {
    %c0_i32 = arith.constant 0 : i32
    %c0_i32_0 = arith.constant 0 : i32
    return %arg0, %c0_i32 : i32, i32
  }
}

</mosaic_0001>

<llo_original>
// kernel: _lambda_.1
$region0: #{_lambda_.1}
  #allocation0 [shape = 'u32[]', space=smem, size = 0x4, offset = 0x4, fixed_abs, tag = 'smem constant byte address 0x4 - core index']
  #allocation1 [shape = 'u32[144,128]{1,0:T(1,128)}', space=vmem, size = 0x12000, scoped, tag = 'internal scratch']
  %s0 = inlined_call_operand.vmem [shape: bf16[256,128], index: 0, kind: input, shape index: {}]
  %s1 = inlined_call_operand.vmem [shape: bf16[128,256], index: 1, kind: input, shape index: {}]
  %s2 = inlined_call_operand.vmem [shape: f32[1,256], index: 2, kind: input, shape index: {}]
  %s3 = inlined_call_operand.vmem [shape: bf16[256,128], index: 3, kind: input, shape index: {}]
  %s4 = inlined_call_operand.vmem [shape: f32[1,128], index: 4, kind: input, shape index: {}]
  %s5 = inlined_call_operand.hbm [shape: bf16[256,128], index: 5, kind: output, shape index: {}]
  %s6 = sld [smem:[#allocation0]]
  $region53: #{_lambda_.1} parent=0
    _
  %s8 = ssub.s32 1, %s6
  %s9 = scalar_select 0, %s8, %s6
  $region1: #{_lambda_.1} parent=0
    #allocation2 [shape = 'u8[65536]{0}', space=vmem, size = 0x10000, scoped, tag = 'output window, operand 0']
    #allocation3 [shape = 's32[2]{0}', space=sflag, size = 0x8, scoped, tag = 'scoped memory for _lambda_.1']
    %10 = vsyncpa [#allocation3], 0
    %s11 = scalar_lea.sflag [#allocation3], 1
    %12 = vsyncpa %s11, 0
    loop: start=0, step=1, limit=4
    $region2: #{_lambda_.1} parent=1 // loop_pre_header
      _
    $region3: #{_lambda_.1} parent=1 // loop_header
      %s14 = sphi 0, %s18
      %p15 = scmp.ge.s32.totalorder %s14, 4
      %s24 = sphi 0, %s26
      %s27 = sphi 0, %s24
      %s28 = sphi 0, %s27
      %s44 = sphi 0, %s28
      %s48 = sphi 0, %s48
      %s50 = sphi 0, %s48
      %s51 = sphi 0, %s50
      %s65 = sphi 0, %s51
      %s69 = sphi 0, %s69
      %s71 = sphi 0, %s69
      %s72 = sphi 0, %s71
      %s86 = sphi 0, %s72
      %s90 = sphi 0, %s90
      %s92 = sphi 0, %s90
      %s93 = sphi 0, %s92
      %s107 = sphi 0, %s93
      %s111 = sphi 0, %s111
      %s113 = sphi 0, %s111
      %s114 = sphi 0, %s113
      %s128 = sphi 0, %s114
      %s134 = sphi 0, %s136
      %s137 = sphi 0, %s134
      %s138 = sphi 0, %s137
      %s154 = sphi 0, %s138
    $region4: #{_lambda_.1} parent=1 // loop_header_branch
      %17 = sbr.rel (%p15) target = $region8
    $region5: #{_lambda_.1} parent=1 // loop_body
      %s19 = ssub.s32 %s14, 1
      %s20 = ssub.s32 %s14, 2
      %s21 = sadd.s32 %s14, 1
      %s22 = ssub.s32 %s14, %s21
      %p23 = scmp.eq.s32.totalorder %s22, 0
      %s25 = sadd.s32 %s24, 1
      %s26 = scalar_select %p23, %s24, %s25
      %p29 = pneg %p23
      %p30 = scmp.eq.s32.totalorder %s14, 1
      %p31 = por %p29, %p30
      %p32 = scmp.ne.s32.totalorder %s24, %s27
      %p33 = scmp.eq.s32.totalorder %s14, 0
      %p34 = por %p32, %p33
      %p35 = scmp.ne.s32.totalorder %s24, %s27
      %p36 = scmp.eq.s32.totalorder %s19, 1
      %p37 = por %p35, %p36
      %p38 = scmp.ne.s32.totalorder %s27, %s28
      %p39 = scmp.eq.s32.totalorder %s19, 0
      %p40 = por %p38, %p39
      %p41 = scmp.ne.s32.totalorder %s27, %s28
      %p42 = scmp.eq.s32.totalorder %s20, 1
      %p43 = por %p41, %p42
      %p45 = scmp.ne.s32.totalorder %s28, %s44
      %p46 = scmp.eq.s32.totalorder %s20, 0
      %p47 = por %p45, %p46
      %s49 = sadd.s32 %s48, 1
      %p52 = scmp.eq.s32.totalorder %s14, 1
      %p53 = scmp.ne.s32.totalorder %s48, %s50
      %p54 = scmp.eq.s32.totalorder %s14, 0
      %p55 = por %p53, %p54
      %p56 = scmp.ne.s32.totalorder %s48, %s50
      %p57 = scmp.eq.s32.totalorder %s19, 1
      %p58 = por %p56, %p57
      %p59 = scmp.ne.s32.totalorder %s50, %s51
      %p60 = scmp.eq.s32.totalorder %s19, 0
      %p61 = por %p59, %p60
      %p62 = scmp.ne.s32.totalorder %s50, %s51
      %p63 = scmp.eq.s32.totalorder %s20, 1
      %p64 = por %p62, %p63
      %p66 = scmp.ne.s32.totalorder %s51, %s65
      %p67 = scmp.eq.s32.totalorder %s20, 0
      %p68 = por %p66, %p67
      %s70 = sadd.s32 %s69, 1
      %p73 = scmp.eq.s32.totalorder %s14, 1
      %p74 = scmp.ne.s32.totalorder %s69, %s71
      %p75 = scmp.eq.s32.totalorder %s14, 0
      %p76 = por %p74, %p75
      %p77 = scmp.ne.s32.totalorder %s69, %s71
      %p78 = scmp.eq.s32.totalorder %s19, 1
      %p79 = por %p77, %p78
      %p80 = scmp.ne.s32.totalorder %s71, %s72
      %p81 = scmp.eq.s32.totalorder %s19, 0
      %p82 = por %p80, %p81
      %p83 = scmp.ne.s32.totalorder %s71, %s72
      %p84 = scmp.eq.s32.totalorder %s20, 1
      %p85 = por %p83, %p84
      %p87 = scmp.ne.s32.totalorder %s72, %s86
      %p88 = scmp.eq.s32.totalorder %s20, 0
      %p89 = por %p87, %p88
      %s91 = sadd.s32 %s90, 1
      %p94 = scmp.eq.s32.totalorder %s14, 1
      %p95 = scmp.ne.s32.totalorder %s90, %s92
      %p96 = scmp.eq.s32.totalorder %s14, 0
      %p97 = por %p95, %p96
      %p98 = scmp.ne.s32.totalorder %s90, %s92
      %p99 = scmp.eq.s32.totalorder %s19, 1
      %p100 = por %p98, %p99
      %p101 = scmp.ne.s32.totalorder %s92, %s93
      %p102 = scmp.eq.s32.totalorder %s19, 0
      %p103 = por %p101, %p102
      %p104 = scmp.ne.s32.totalorder %s92, %s93
      %p105 = scmp.eq.s32.totalorder %s20, 1
      %p106 = por %p104, %p105
      %p108 = scmp.ne.s32.totalorder %s93, %s107
      %p109 = scmp.eq.s32.totalorder %s20, 0
      %p110 = por %p108, %p109
      %s112 = sadd.s32 %s111, 1
      %p115 = scmp.eq.s32.totalorder %s14, 1
      %p116 = scmp.ne.s32.totalorder %s111, %s113
      %p117 = scmp.eq.s32.totalorder %s14, 0
      %p118 = por %p116, %p117
      %p119 = scmp.ne.s32.totalorder %s111, %s113
      %p120 = scmp.eq.s32.totalorder %s19, 1
      %p121 = por %p119, %p120
      %p122 = scmp.ne.s32.totalorder %s113, %s114
      %p123 = scmp.eq.s32.totalorder %s19, 0
      %p124 = por %p122, %p123
      %p125 = scmp.ne.s32.totalorder %s113, %s114
      %p126 = scmp.eq.s32.totalorder %s20, 1
      %p127 = por %p125, %p126
      %p129 = scmp.ne.s32.totalorder %s114, %s128
      %p130 = scmp.eq.s32.totalorder %s20, 0
      %p131 = por %p129, %p130
      %s132 = ssub.s32 %s14, %s21
      %p133 = scmp.eq.s32.totalorder %s132, 0
      %s135 = sadd.s32 %s134, 1
      %s136 = scalar_select %p133, %s134, %s135
      %p139 = pneg %p133
      %p140 = scmp.eq.s32.totalorder %s14, 1
      %p141 = por %p139, %p140
      %p142 = scmp.ne.s32.totalorder %s134, %s137
      %p143 = scmp.eq.s32.totalorder %s14, 0
      %p144 = por %p142, %p143
      %p145 = scmp.ne.s32.totalorder %s134, %s137
      %p146 = scmp.eq.s32.totalorder %s19, 1
      %p147 = por %p145, %p146
      %p148 = scmp.ne.s32.totalorder %s137, %s138
      %p149 = scmp.eq.s32.totalorder %s19, 0
      %p150 = por %p148, %p149
      %p151 = scmp.ne.s32.totalorder %s137, %s138
      %p152 = scmp.eq.s32.totalorder %s20, 1
      %p153 = por %p151, %p152
      %p155 = scmp.ne.s32.totalorder %s138, %s154
      %p156 = scmp.eq.s32.totalorder %s20, 0
      %p157 = por %p155, %p156
      %p158 = scmp.le.s32.totalorder 1, %s14
      %p159 = scmp.lt.s32.totalorder %s14, 3
      %p160 = pnand %p158, %p159
      %p161 = pneg %p160
      // Predicated region
      $region9: #{_lambda_.1} parent=5 // pred_check
        _
      $region10: #{_lambda_.1} parent=5 // pred_check_branch
        %163 = sbr.rel (%p160) target = $region12
      $region11: #{_lambda_.1} parent=5 // pred_region
        %s164 = ssub.s32 %s14, 1
        // Predicated region
        $region13: #{_lambda_.1} parent=11 // pred_check
          %p165 = pneg %p61
        $region14: #{_lambda_.1} parent=11 // pred_check_branch
          %167 = sbr.rel (%p165) target = $region16
        $region15: #{_lambda_.1} parent=11 // pred_region
          _
        $region16: #{_lambda_.1} parent=11 // pred_fallthru
          _
        // Predicated region
        $region17: #{_lambda_.1} parent=11 // pred_check
          %p168 = pneg %p82
        $region18: #{_lambda_.1} parent=11 // pred_check_branch
          %170 = sbr.rel (%p168) target = $region20
        $region19: #{_lambda_.1} parent=11 // pred_region
          _
        $region20: #{_lambda_.1} parent=11 // pred_fallthru
          _
        // Predicated region
        $region21: #{_lambda_.1} parent=11 // pred_check
          %p171 = pneg %p103
        $region22: #{_lambda_.1} parent=11 // pred_check_branch
          %173 = sbr.rel (%p171) target = $region24
        $region23: #{_lambda_.1} parent=11 // pred_region
          _
        $region24: #{_lambda_.1} parent=11 // pred_fallthru
          _
        // Predicated region
        $region25: #{_lambda_.1} parent=11 // pred_check
          %p174 = pneg %p124
        $region26: #{_lambda_.1} parent=11 // pred_check_branch
          %176 = sbr.rel (%p174) target = $region28
        $region27: #{_lambda_.1} parent=11 // pred_region
          _
        $region28: #{_lambda_.1} parent=11 // pred_fallthru
          _
      $region12: #{_lambda_.1} parent=5 // pred_fallthru
        _
      %p177 = scmp.lt.s32.totalorder %s14, 2
      // Predicated region
      $region29: #{_lambda_.1} parent=5 // pred_check
        %p178 = pneg %p177
      $region30: #{_lambda_.1} parent=5 // pred_check_branch
        %180 = sbr.rel (%p178) target = $region32
      $region31: #{_lambda_.1} parent=5 // pred_region
        // Predicated region
        $region33: #{_lambda_.1} parent=31 // pred_check
          %p181 = pneg %p34
        $region34: #{_lambda_.1} parent=31 // pred_check_branch
          %183 = sbr.rel (%p181) target = $region36
        $region35: #{_lambda_.1} parent=31 // pred_region
          %s184 = smul.u32 16, %s14
          %p185 = scmp.lt.s32.totalorder %s184, 31
          %s186 = scalar_select %p185, %s184, 31
          %s187 = smul.addr %s186, 4
          %s188 = scalar_lea.vmem %s0, %s187
          %s189 = smul.u32 16, %s14
        $region36: #{_lambda_.1} parent=31 // pred_fallthru
          _
      $region32: #{_lambda_.1} parent=5 // pred_fallthru
        _
      %p190 = scmp.le.s32.totalorder 1, %s14
      %p191 = scmp.lt.s32.totalorder %s14, 3
      %p192 = pnand %p190, %p191
      %p193 = pneg %p192
      // Predicated region
      $region37: #{_lambda_.1} parent=5 // pred_check
        _
      $region38: #{_lambda_.1} parent=5 // pred_check_branch
        %195 = sbr.rel (%p192) target = $region40
      $region39: #{_lambda_.1} parent=5 // pred_region
        %s196 = ssub.s32 %s14, 1
        %s197 = smul.u32 16, %s19
        %p198 = scmp.lt.s32.totalorder %s197, 31
        %s199 = scalar_select %p198, %s197, 31
        %s200 = smul.addr %s199, 4
        %s201 = scalar_lea.vmem %s0, %s200
        %p202 = pneg %p40
        %p203 = pneg %p37
        %p204 = pneg %p61
        %p205 = pneg %p58
        %p206 = pneg %p82
        %p207 = pneg %p79
        %p208 = pneg %p103
        %p209 = pneg %p100
        %p210 = pneg %p124
        %p211 = pneg %p121
        %p212 = pneg %p150
        %p213 = pneg %p147
        %s214 = sand.u32 %s137, 1
        %s215 = scalar_lea.sflag [#allocation3], %s214
        %s216 = sand.u32 %s137, 1
        %s217 = smul.addr %s216, 64
        %s218 = scalar_lea.vmem [#allocation2], %s217
        %s219 = smul.u32 16, %s19
        %p220 = scmp.lt.s32.totalorder %s219, 31
        %s221 = scalar_select %p220, %s219, 31
        %s222 = smul.addr %s221, 4
        %s223 = scalar_lea.vmem %s0, %s222
        %s224 = smul.u32 16, %s19
        %s225 = smul.u32 16, %s19
        %v227 = vld [vmem:[%s223] sm:$0xf]
        %v228 = vld [vmem:[%s223 + $0x4] sm:$0xf]
        %v229 = vld [vmem:[%s223 + $0x8] sm:$0xf]
        %v230 = vld [vmem:[%s223 + $0xc] sm:$0xf]
        %v231 = vld [vmem:[%s223 + $0x10] sm:$0xf]
        %v232 = vld [vmem:[%s223 + $0x14] sm:$0xf]
        %v233 = vld [vmem:[%s223 + $0x18] sm:$0xf]
        %v234 = vld [vmem:[%s223 + $0x1c] sm:$0xf]
        %v235 = vld [vmem:[%s223 + $0x20] sm:$0xf]
        %v236 = vld [vmem:[%s223 + $0x24] sm:$0xf]
        %v237 = vld [vmem:[%s223 + $0x28] sm:$0xf]
        %v238 = vld [vmem:[%s223 + $0x2c] sm:$0xf]
        %v239 = vld [vmem:[%s223 + $0x30] sm:$0xf]
        %v240 = vld [vmem:[%s223 + $0x34] sm:$0xf]
        %v241 = vld [vmem:[%s223 + $0x38] sm:$0xf]
        %v242 = vld [vmem:[%s223 + $0x3c] sm:$0xf]
        %v243 = vld [vmem:[%s1] sm:$0xff]
        %v244 = vld [vmem:[%s1 + $0x8] sm:$0xff]
        %v245 = vld [vmem:[%s1 + $0x10] sm:$0xff]
        %v246 = vld [vmem:[%s1 + $0x18] sm:$0xff]
        %v247 = vld [vmem:[%s1 + $0x20] sm:$0xff]
        %v248 = vld [vmem:[%s1 + $0x28] sm:$0xff]
        %v249 = vld [vmem:[%s1 + $0x30] sm:$0xff]
        %v250 = vld [vmem:[%s1 + $0x38] sm:$0xff]
        %v251 = vld [vmem:[%s1 + $0x40] sm:$0xff]
        %v252 = vld [vmem:[%s1 + $0x48] sm:$0xff]
        %v253 = vld [vmem:[%s1 + $0x50] sm:$0xff]
        %v254 = vld [vmem:[%s1 + $0x58] sm:$0xff]
        %v255 = vld [vmem:[%s1 + $0x60] sm:$0xff]
        %v256 = vld [vmem:[%s1 + $0x68] sm:$0xff]
        %v257 = vld [vmem:[%s1 + $0x70] sm:$0xff]
        %v258 = vld [vmem:[%s1 + $0x78] sm:$0xff]
        %v259 = vld [vmem:[%s2] sm:$0x3]
        %v261 = vlaneseq
        %v262 = vshrl.u32 %v261, 7
        %v263 = vsub.s32 0, %v262
        %v264 = vrot.slane %v259, %v263
        %v265 = vlaneseq
        %v266 = vshrl.u32 %v265, 7
        %v267 = vsub.s32 1, %v266
        %v268 = vrot.slane %v259, %v267
        %v287 = vunpack.c.l.b16 %v227
        %v288 = vunpack.c.l.b16 %v228
        %v289 = vunpack.c.l.b16 %v229
        %v290 = vunpack.c.l.b16 %v230
        %v291 = vunpack.c.l.b16 %v231
        %v292 = vunpack.c.l.b16 %v232
        %v293 = vunpack.c.l.b16 %v233
        %v294 = vunpack.c.l.b16 %v234
        %v295 = vunpack.c.l.b16 %v235
        %v296 = vunpack.c.l.b16 %v236
        %v297 = vunpack.c.l.b16 %v237
        %v298 = vunpack.c.l.b16 %v238
        %v299 = vunpack.c.l.b16 %v239
        %v300 = vunpack.c.l.b16 %v240
        %v301 = vunpack.c.l.b16 %v241
        %v302 = vunpack.c.l.b16 %v242
        %v303 = vpack.c.b16 %v288, %v287
        %v304 = vpack.c.b16 %v290, %v289
        %v305 = vpack.c.b16 %v292, %v291
        %v306 = vpack.c.b16 %v294, %v293
        %v307 = vpack.c.b16 %v296, %v295
        %v308 = vpack.c.b16 %v298, %v297
        %v309 = vpack.c.b16 %v300, %v299
        %v310 = vpack.c.b16 %v302, %v301
        %v335 = vunpack.c.l.b16 %v243
        %v336 = vunpack.c.h.b16 %v243
        %v337 = vunpack.c.l.b16 %v244
        %v338 = vunpack.c.h.b16 %v244
        %v339 = vunpack.c.l.b16 %v245
        %v340 = vunpack.c.h.b16 %v245
        %v341 = vunpack.c.l.b16 %v246
        %v342 = vunpack.c.h.b16 %v246
        %v343 = vunpack.c.l.b16 %v247
        %v344 = vunpack.c.h.b16 %v247
        %v345 = vunpack.c.l.b16 %v248
        %v346 = vunpack.c.h.b16 %v248
        %v347 = vunpack.c.l.b16 %v249
        %v348 = vunpack.c.h.b16 %v249
        %v349 = vunpack.c.l.b16 %v250
        %v350 = vunpack.c.h.b16 %v250
        %v351 = vunpack.c.l.b16 %v251
        %v352 = vunpack.c.h.b16 %v251
        %v353 = vunpack.c.l.b16 %v252
        %v354 = vunpack.c.h.b16 %v252
        %v355 = vunpack.c.l.b16 %v253
        %v356 = vunpack.c.h.b16 %v253
        %v357 = vunpack.c.l.b16 %v254
        %v358 = vunpack.c.h.b16 %v254
        %v359 = vunpack.c.l.b16 %v255
        %v360 = vunpack.c.h.b16 %v255
        %v361 = vunpack.c.l.b16 %v256
        %v362 = vunpack.c.h.b16 %v256
        %v363 = vunpack.c.l.b16 %v257
        %v364 = vunpack.c.h.b16 %v257
        %v365 = vunpack.c.l.b16 %v258
        %v366 = vunpack.c.h.b16 %v258
        %v367 = vpack.c.b16 %v337, %v335
        %v368 = vpack.c.b16 %v338, %v336
        %v369 = vpack.c.b16 %v341, %v339
        %v370 = vpack.c.b16 %v342, %v340
        %v371 = vpack.c.b16 %v345, %v343
        %v372 = vpack.c.b16 %v346, %v344
        %v373 = vpack.c.b16 %v349, %v347
        %v374 = vpack.c.b16 %v350, %v348
        %v375 = vpack.c.b16 %v353, %v351
        %v376 = vpack.c.b16 %v354, %v352
        %v377 = vpack.c.b16 %v357, %v355
        %v378 = vpack.c.b16 %v358, %v356
        %v379 = vpack.c.b16 %v361, %v359
        %v380 = vpack.c.b16 %v362, %v360
        %v381 = vpack.c.b16 %v365, %v363
        %v382 = vpack.c.b16 %v366, %v364
        %399 = vmatprep.subr.bf16.mxu0 %v368
        %400 = vmatpush1.bf16.msra.mxu0 %v367
        %401 = vmatprep.subr.bf16.mxu0 %v370
        %402 = vmatpush1.bf16.msra.mxu0 %v369
        %403 = vmatprep.subr.bf16.mxu0 %v372
        %404 = vmatpush1.bf16.msra.mxu0 %v371
        %405 = vmatprep.subr.bf16.mxu0 %v374
        %406 = vmatpush1.bf16.msra.mxu0 %v373
        %407 = vmatprep.subr.bf16.mxu0 %v376
        %408 = vmatpush1.bf16.msra.mxu0 %v375
        %409 = vmatprep.subr.bf16.mxu0 %v378
        %410 = vmatpush1.bf16.msra.mxu0 %v377
        %411 = vmatprep.subr.bf16.mxu0 %v380
        %412 = vmatpush1.bf16.msra.mxu0 %v379
        %413 = vmatprep.subr.bf16.mxu0 %v382
        %414 = vmatpush1.bf16.msra.mxu0 %v381
        %415 = vmatprep.subr.bf16.mxu0 0
        %416 = vmatpush1.bf16.msra.mxu0 0
        %417 = vmatprep.subr.bf16.mxu0 0
        %418 = vmatpush1.bf16.msra.mxu0 0
        %419 = vmatprep.subr.bf16.mxu0 0
        %420 = vmatpush1.bf16.msra.mxu0 0
        %421 = vmatprep.subr.bf16.mxu0 0
        %422 = vmatpush1.bf16.msra.mxu0 0
        %423 = vmatprep.subr.bf16.mxu0 0
        %424 = vmatpush1.bf16.msra.mxu0 0
        %425 = vmatprep.subr.bf16.mxu0 0
        %426 = vmatpush1.bf16.msra.mxu0 0
        %427 = vmatprep.subr.bf16.mxu0 0
        %428 = vmatpush1.bf16.msra.mxu0 0
        %429 = vmatprep.subr.bf16.mxu0 0
        %430 = vmatpush1.bf16.msra.mxu0 0
        %431 = vmatprep.mubr.bf16.mxu0 0
        %432 = vmatmul.mubr.bf16.gmra.mrb[0].mxu0 %v303
        %v433 = vpop.f32.mrb[0].mxu0
        %v434 = vadd.f32 %v264, %v433
        %v435 = vpop.f32.mrb[0].mxu0
        %v436 = vadd.f32 %v268, %v435
        %v437 = vpop.f32.mrb[0].mxu0
        %v438 = vadd.f32 %v264, %v437
        %v439 = vpop.f32.mrb[0].mxu0
        %v440 = vadd.f32 %v268, %v439
        %441 = vmatprep.mubr.bf16.mxu0 0
        %442 = vmatmul.mubr.bf16.gmra.mrb[0].mxu0 %v304
        %v443 = vpop.f32.mrb[0].mxu0
        %v444 = vadd.f32 %v264, %v443
        %v445 = vpop.f32.mrb[0].mxu0
        %v446 = vadd.f32 %v268, %v445
        %v447 = vpop.f32.mrb[0].mxu0
        %v448 = vadd.f32 %v264, %v447
        %v449 = vpop.f32.mrb[0].mxu0
        %v450 = vadd.f32 %v268, %v449
        %451 = vmatprep.mubr.bf16.mxu0 0
        %452 = vmatmul.mubr.bf16.gmra.mrb[0].mxu0 %v305
        %v453 = vpop.f32.mrb[0].mxu0
        %v454 = vadd.f32 %v264, %v453
        %v455 = vpop.f32.mrb[0].mxu0
        %v456 = vadd.f32 %v268, %v455
        %v457 = vpop.f32.mrb[0].mxu0
        %v458 = vadd.f32 %v264, %v457
        %v459 = vpop.f32.mrb[0].mxu0
        %v460 = vadd.f32 %v268, %v459
        %461 = vmatprep.mubr.bf16.mxu0 0
        %462 = vmatmul.mubr.bf16.gmra.mrb[0].mxu0 %v306
        %v463 = vpop.f32.mrb[0].mxu0
        %v464 = vadd.f32 %v264, %v463
        %v465 = vpop.f32.mrb[0].mxu0
        %v466 = vadd.f32 %v268, %v465
        %v467 = vpop.f32.mrb[0].mxu0
        %v468 = vadd.f32 %v264, %v467
        %v469 = vpop.f32.mrb[0].mxu0
        %v470 = vadd.f32 %v268, %v469
        %471 = vmatprep.mubr.bf16.mxu0 0
        %472 = vmatmul.mubr.bf16.gmra.mrb[0].mxu0 %v307
        %v473 = vpop.f32.mrb[0].mxu0
        %v474 = vadd.f32 %v264, %v473
        %v475 = vpop.f32.mrb[0].mxu0
        %v476 = vadd.f32 %v268, %v475
        %v477 = vpop.f32.mrb[0].mxu0
        %v478 = vadd.f32 %v264, %v477
        %v479 = vpop.f32.mrb[0].mxu0
        %v480 = vadd.f32 %v268, %v479
        %481 = vmatprep.mubr.bf16.mxu0 0
        %482 = vmatmul.mubr.bf16.gmra.mrb[0].mxu0 %v308
        %v483 = vpop.f32.mrb[0].mxu0
        %v484 = vadd.f32 %v264, %v483
        %v485 = vpop.f32.mrb[0].mxu0
        %v486 = vadd.f32 %v268, %v485
        %v487 = vpop.f32.mrb[0].mxu0
        %v488 = vadd.f32 %v264, %v487
        %v489 = vpop.f32.mrb[0].mxu0
        %v490 = vadd.f32 %v268, %v489
        %491 = vmatprep.mubr.bf16.mxu0 0
        %492 = vmatmul.mubr.bf16.gmra.mrb[0].mxu0 %v309
        %v493 = vpop.f32.mrb[0].mxu0
        %v494 = vadd.f32 %v264, %v493
        %v495 = vpop.f32.mrb[0].mxu0
        %v496 = vadd.f32 %v268, %v495
        %v497 = vpop.f32.mrb[0].mxu0
        %v498 = vadd.f32 %v264, %v497
        %v499 = vpop.f32.mrb[0].mxu0
        %v500 = vadd.f32 %v268, %v499
        %501 = vmatprep.mubr.bf16.mxu0 0
        %502 = vmatmul.mubr.bf16.gmra.mrb[0].mxu0 %v310
        %v503 = vpop.f32.mrb[0].mxu0
        %v504 = vadd.f32 %v264, %v503
        %v505 = vpop.f32.mrb[0].mxu0
        %v506 = vadd.f32 %v268, %v505
        %v507 = vpop.f32.mrb[0].mxu0
        %v508 = vadd.f32 %v264, %v507
        %v509 = vpop.f32.mrb[0].mxu0
        %v510 = vadd.f32 %v268, %v509
        %511 = vdwg.mxu0
        %v512 = vmul.f32 %v434, 0.5
        %v513 = vmul.f32 %v436, 0.5
        %v514 = vmul.f32 %v438, 0.5
        %v515 = vmul.f32 %v440, 0.5
        %v516 = vmul.f32 %v444, 0.5
        %v517 = vmul.f32 %v446, 0.5
        %v518 = vmul.f32 %v448, 0.5
        %v519 = vmul.f32 %v450, 0.5
        %v520 = vmul.f32 %v454, 0.5
        %v521 = vmul.f32 %v456, 0.5
        %v522 = vmul.f32 %v458, 0.5
        %v523 = vmul.f32 %v460, 0.5
        %v524 = vmul.f32 %v464, 0.5
        %v525 = vmul.f32 %v466, 0.5
        %v526 = vmul.f32 %v468, 0.5
        %v527 = vmul.f32 %v470, 0.5
        %v528 = vmul.f32 %v474, 0.5
        %v529 = vmul.f32 %v476, 0.5
        %v530 = vmul.f32 %v478, 0.5
        %v531 = vmul.f32 %v480, 0.5
        %v532 = vmul.f32 %v484, 0.5
        %v533 = vmul.f32 %v486, 0.5
        %v534 = vmul.f32 %v488, 0.5
        %v535 = vmul.f32 %v490, 0.5
        %v536 = vmul.f32 %v494, 0.5
        %v537 = vmul.f32 %v496, 0.5
        %v538 = vmul.f32 %v498, 0.5
        %v539 = vmul.f32 %v500, 0.5
        %v540 = vmul.f32 %v504, 0.5
        %v541 = vmul.f32 %v506, 0.5
        %v542 = vmul.f32 %v508, 0.5
        %v543 = vmul.f32 %v510, 0.5
        %v544 = vmul.f32 %v434, 0.044715
        %v545 = vmul.f32 %v436, 0.044715
        %v546 = vmul.f32 %v438, 0.044715
        %v547 = vmul.f32 %v440, 0.044715
        %v548 = vmul.f32 %v444, 0.044715
        %v549 = vmul.f32 %v446, 0.044715
        %v550 = vmul.f32 %v448, 0.044715
        %v551 = vmul.f32 %v450, 0.044715
        %v552 = vmul.f32 %v454, 0.044715
        %v553 = vmul.f32 %v456, 0.044715
        %v554 = vmul.f32 %v458, 0.044715
        %v555 = vmul.f32 %v460, 0.044715
        %v556 = vmul.f32 %v464, 0.044715
        %v557 = vmul.f32 %v466, 0.044715
        %v558 = vmul.f32 %v468, 0.044715
        %v559 = vmul.f32 %v470, 0.044715
        %v560 = vmul.f32 %v474, 0.044715
        %v561 = vmul.f32 %v476, 0.044715
        %v562 = vmul.f32 %v478, 0.044715
        %v563 = vmul.f32 %v480, 0.044715
        %v564 = vmul.f32 %v484, 0.044715
        %v565 = vmul.f32 %v486, 0.044715
        %v566 = vmul.f32 %v488, 0.044715
        %v567 = vmul.f32 %v490, 0.044715
        %v568 = vmul.f32 %v494, 0.044715
        %v569 = vmul.f32 %v496, 0.044715
        %v570 = vmul.f32 %v498, 0.044715
        %v571 = vmul.f32 %v500, 0.044715
        %v572 = vmul.f32 %v504, 0.044715
        %v573 = vmul.f32 %v506, 0.044715
        %v574 = vmul.f32 %v508, 0.044715
        %v575 = vmul.f32 %v510, 0.044715
        %v576 = vmul.f32 %v544, %v434
        %v577 = vmul.f32 %v545, %v436
        %v578 = vmul.f32 %v546, %v438
        %v579 = vmul.f32 %v547, %v440
        %v580 = vmul.f32 %v548, %v444
        %v581 = vmul.f32 %v549, %v446
        %v582 = vmul.f32 %v550, %v448
        %v583 = vmul.f32 %v551, %v450
        %v584 = vmul.f32 %v552, %v454
        %v585 = vmul.f32 %v553, %v456
        %v586 = vmul.f32 %v554, %v458
        %v587 = vmul.f32 %v555, %v460
        %v588 = vmul.f32 %v556, %v464
        %v589 = vmul.f32 %v557, %v466
        %v590 = vmul.f32 %v558, %v468
        %v591 = vmul.f32 %v559, %v470
        %v592 = vmul.f32 %v560, %v474
        %v593 = vmul.f32 %v561, %v476
        %v594 = vmul.f32 %v562, %v478
        %v595 = vmul.f32 %v563, %v480
        %v596 = vmul.f32 %v564, %v484
        %v597 = vmul.f32 %v565, %v486
        %v598 = vmul.f32 %v566, %v488
        %v599 = vmul.f32 %v567, %v490
        %v600 = vmul.f32 %v568, %v494
        %v601 = vmul.f32 %v569, %v496
        %v602 = vmul.f32 %v570, %v498
        %v603 = vmul.f32 %v571, %v500
        %v604 = vmul.f32 %v572, %v504
        %v605 = vmul.f32 %v573, %v506
        %v606 = vmul.f32 %v574, %v508
        %v607 = vmul.f32 %v575, %v510
        %v608 = vmul.f32 %v576, %v434
        %v609 = vmul.f32 %v577, %v436
        %v610 = vmul.f32 %v578, %v438
        %v611 = vmul.f32 %v579, %v440
        %v612 = vmul.f32 %v580, %v444
        %v613 = vmul.f32 %v581, %v446
        %v614 = vmul.f32 %v582, %v448
        %v615 = vmul.f32 %v583, %v450
        %v616 = vmul.f32 %v584, %v454
        %v617 = vmul.f32 %v585, %v456
        %v618 = vmul.f32 %v586, %v458
        %v619 = vmul.f32 %v587, %v460
        %v620 = vmul.f32 %v588, %v464
        %v621 = vmul.f32 %v589, %v466
        %v622 = vmul.f32 %v590, %v468
        %v623 = vmul.f32 %v591, %v470
        %v624 = vmul.f32 %v592, %v474
        %v625 = vmul.f32 %v593, %v476
        %v626 = vmul.f32 %v594, %v478
        %v627 = vmul.f32 %v595, %v480
        %v628 = vmul.f32 %v596, %v484
        %v629 = vmul.f32 %v597, %v486
        %v630 = vmul.f32 %v598, %v488
        %v631 = vmul.f32 %v599, %v490
        %v632 = vmul.f32 %v600, %v494
        %v633 = vmul.f32 %v601, %v496
        %v634 = vmul.f32 %v602, %v498
        %v635 = vmul.f32 %v603, %v500
        %v636 = vmul.f32 %v604, %v504
        %v637 = vmul.f32 %v605, %v506
        %v638 = vmul.f32 %v606, %v508
        %v639 = vmul.f32 %v607, %v510
        %v640 = vadd.f32 %v434, %v608
        %v641 = vadd.f32 %v436, %v609
        %v642 = vadd.f32 %v438, %v610
        %v643 = vadd.f32 %v440, %v611
        %v644 = vadd.f32 %v444, %v612
        %v645 = vadd.f32 %v446, %v613
        %v646 = vadd.f32 %v448, %v614
        %v647 = vadd.f32 %v450, %v615
        %v648 = vadd.f32 %v454, %v616
        %v649 = vadd.f32 %v456, %v617
        %v650 = vadd.f32 %v458, %v618
        %v651 = vadd.f32 %v460, %v619
        %v652 = vadd.f32 %v464, %v620
        %v653 = vadd.f32 %v466, %v621
        %v654 = vadd.f32 %v468, %v622
        %v655 = vadd.f32 %v470, %v623
        %v656 = vadd.f32 %v474, %v624
        %v657 = vadd.f32 %v476, %v625
        %v658 = vadd.f32 %v478, %v626
        %v659 = vadd.f32 %v480, %v627
        %v660 = vadd.f32 %v484, %v628
        %v661 = vadd.f32 %v486, %v629
        %v662 = vadd.f32 %v488, %v630
        %v663 = vadd.f32 %v490, %v631
        %v664 = vadd.f32 %v494, %v632
        %v665 = vadd.f32 %v496, %v633
        %v666 = vadd.f32 %v498, %v634
        %v667 = vadd.f32 %v500, %v635
        %v668 = vadd.f32 %v504, %v636
        %v669 = vadd.f32 %v506, %v637
        %v670 = vadd.f32 %v508, %v638
        %v671 = vadd.f32 %v510, %v639
        %v672 = vmul.f32 %v640, 0.7978846
        %v673 = vmul.f32 %v641, 0.7978846
        %v674 = vmul.f32 %v642, 0.7978846
        %v675 = vmul.f32 %v643, 0.7978846
        %v676 = vmul.f32 %v644, 0.7978846
        %v677 = vmul.f32 %v645, 0.7978846
        %v678 = vmul.f32 %v646, 0.7978846
        %v679 = vmul.f32 %v647, 0.7978846
        %v680 = vmul.f32 %v648, 0.7978846
        %v681 = vmul.f32 %v649, 0.7978846
        %v682 = vmul.f32 %v650, 0.7978846
        %v683 = vmul.f32 %v651, 0.7978846
        %v684 = vmul.f32 %v652, 0.7978846
        %v685 = vmul.f32 %v653, 0.7978846
        %v686 = vmul.f32 %v654, 0.7978846
        %v687 = vmul.f32 %v655, 0.7978846
        %v688 = vmul.f32 %v656, 0.7978846
        %v689 = vmul.f32 %v657, 0.7978846
        %v690 = vmul.f32 %v658, 0.7978846
        %v691 = vmul.f32 %v659, 0.7978846
        %v692 = vmul.f32 %v660, 0.7978846
        %v693 = vmul.f32 %v661, 0.7978846
        %v694 = vmul.f32 %v662, 0.7978846
        %v695 = vmul.f32 %v663, 0.7978846
        %v696 = vmul.f32 %v664, 0.7978846
        %v697 = vmul.f32 %v665, 0.7978846
        %v698 = vmul.f32 %v666, 0.7978846
        %v699 = vmul.f32 %v667, 0.7978846
        %v700 = vmul.f32 %v668, 0.7978846
        %v701 = vmul.f32 %v669, 0.7978846
        %v702 = vmul.f32 %v670, 0.7978846
        %v703 = vmul.f32 %v671, 0.7978846
        %v704 = vtanh.pop %v672
        %v705 = vtanh.pop %v673
        %v706 = vtanh.pop %v674
        %v707 = vtanh.pop %v675
        %v708 = vtanh.pop %v676
        %v709 = vtanh.pop %v677
        %v710 = vtanh.pop %v678
        %v711 = vtanh.pop %v679
        %v712 = vtanh.pop %v680
        %v713 = vtanh.pop %v681
        %v714 = vtanh.pop %v682
        %v715 = vtanh.pop %v683
        %v716 = vtanh.pop %v684
        %v717 = vtanh.pop %v685
        %v718 = vtanh.pop %v686
        %v719 = vtanh.pop %v687
        %v720 = vtanh.pop %v688
        %v721 = vtanh.pop %v689
        %v722 = vtanh.pop %v690
        %v723 = vtanh.pop %v691
        %v724 = vtanh.pop %v692
        %v725 = vtanh.pop %v693
        %v726 = vtanh.pop %v694
        %v727 = vtanh.pop %v695
        %v728 = vtanh.pop %v696
        %v729 = vtanh.pop %v697
        %v730 = vtanh.pop %v698
        %v731 = vtanh.pop %v699
        %v732 = vtanh.pop %v700
        %v733 = vtanh.pop %v701
        %v734 = vtanh.pop %v702
        %v735 = vtanh.pop %v703
        %v736 = vadd.f32 %v704, 1.0
        %v737 = vadd.f32 %v705, 1.0
        %v738 = vadd.f32 %v706, 1.0
        %v739 = vadd.f32 %v707, 1.0
        %v740 = vadd.f32 %v708, 1.0
        %v741 = vadd.f32 %v709, 1.0
        %v742 = vadd.f32 %v710, 1.0
        %v743 = vadd.f32 %v711, 1.0
        %v744 = vadd.f32 %v712, 1.0
        %v745 = vadd.f32 %v713, 1.0
        %v746 = vadd.f32 %v714, 1.0
        %v747 = vadd.f32 %v715, 1.0
        %v748 = vadd.f32 %v716, 1.0
        %v749 = vadd.f32 %v717, 1.0
        %v750 = vadd.f32 %v718, 1.0
        %v751 = vadd.f32 %v719, 1.0
        %v752 = vadd.f32 %v720, 1.0
        %v753 = vadd.f32 %v721, 1.0
        %v754 = vadd.f32 %v722, 1.0
        %v755 = vadd.f32 %v723, 1.0
        %v756 = vadd.f32 %v724, 1.0
        %v757 = vadd.f32 %v725, 1.0
        %v758 = vadd.f32 %v726, 1.0
        %v759 = vadd.f32 %v727, 1.0
        %v760 = vadd.f32 %v728, 1.0
        %v761 = vadd.f32 %v729, 1.0
        %v762 = vadd.f32 %v730, 1.0
        %v763 = vadd.f32 %v731, 1.0
        %v764 = vadd.f32 %v732, 1.0
        %v765 = vadd.f32 %v733, 1.0
        %v766 = vadd.f32 %v734, 1.0
        %v767 = vadd.f32 %v735, 1.0
        %v768 = vmul.f32 %v512, %v736
        %v769 = vmul.f32 %v513, %v737
        %v770 = vmul.f32 %v514, %v738
        %v771 = vmul.f32 %v515, %v739
        %v772 = vmul.f32 %v516, %v740
        %v773 = vmul.f32 %v517, %v741
        %v774 = vmul.f32 %v518, %v742
        %v775 = vmul.f32 %v519, %v743
        %v776 = vmul.f32 %v520, %v744
        %v777 = vmul.f32 %v521, %v745
        %v778 = vmul.f32 %v522, %v746
        %v779 = vmul.f32 %v523, %v747
        %v780 = vmul.f32 %v524, %v748
        %v781 = vmul.f32 %v525, %v749
        %v782 = vmul.f32 %v526, %v750
        %v783 = vmul.f32 %v527, %v751
        %v784 = vmul.f32 %v528, %v752
        %v785 = vmul.f32 %v529, %v753
        %v786 = vmul.f32 %v530, %v754
        %v787 = vmul.f32 %v531, %v755
        %v788 = vmul.f32 %v532, %v756
        %v789 = vmul.f32 %v533, %v757
        %v790 = vmul.f32 %v534, %v758
        %v791 = vmul.f32 %v535, %v759
        %v792 = vmul.f32 %v536, %v760
        %v793 = vmul.f32 %v537, %v761
        %v794 = vmul.f32 %v538, %v762
        %v795 = vmul.f32 %v539, %v763
        %v796 = vmul.f32 %v540, %v764
        %v797 = vmul.f32 %v541, %v765
        %v798 = vmul.f32 %v542, %v766
        %v799 = vmul.f32 %v543, %v767
        %v800 = vpack.c.bf16 %v770, %v768
        %v801 = vpack.c.bf16 %v771, %v769
        %v802 = vpack.c.bf16 %v774, %v772
        %v803 = vpack.c.bf16 %v775, %v773
        %v804 = vpack.c.bf16 %v778, %v776
        %v805 = vpack.c.bf16 %v779, %v777
        %v806 = vpack.c.bf16 %v782, %v780
        %v807 = vpack.c.bf16 %v783, %v781
        %v808 = vpack.c.bf16 %v786, %v784
        %v809 = vpack.c.bf16 %v787, %v785
        %v810 = vpack.c.bf16 %v790, %v788
        %v811 = vpack.c.bf16 %v791, %v789
        %v812 = vpack.c.bf16 %v794, %v792
        %v813 = vpack.c.bf16 %v795, %v793
        %v814 = vpack.c.bf16 %v798, %v796
        %v815 = vpack.c.bf16 %v799, %v797
        %v816 = vld [vmem:[%s3] sm:$0xf]
        %v817 = vld [vmem:[%s3 + $0x4] sm:$0xf]
        %v818 = vld [vmem:[%s3 + $0x8] sm:$0xf]
        %v819 = vld [vmem:[%s3 + $0xc] sm:$0xf]
        %v820 = vld [vmem:[%s3 + $0x10] sm:$0xf]
        %v821 = vld [vmem:[%s3 + $0x14] sm:$0xf]
        %v822 = vld [vmem:[%s3 + $0x18] sm:$0xf]
        %v823 = vld [vmem:[%s3 + $0x1c] sm:$0xf]
        %v824 = vld [vmem:[%s3 + $0x20] sm:$0xf]
        %v825 = vld [vmem:[%s3 + $0x24] sm:$0xf]
        %v826 = vld [vmem:[%s3 + $0x28] sm:$0xf]
        %v827 = vld [vmem:[%s3 + $0x2c] sm:$0xf]
        %v828 = vld [vmem:[%s3 + $0x30] sm:$0xf]
        %v829 = vld [vmem:[%s3 + $0x34] sm:$0xf]
        %v830 = vld [vmem:[%s3 + $0x38] sm:$0xf]
        %v831 = vld [vmem:[%s3 + $0x3c] sm:$0xf]
        %v832 = vld [vmem:[%s3 + $0x40] sm:$0xf]
        %v833 = vld [vmem:[%s3 + $0x44] sm:$0xf]
        %v834 = vld [vmem:[%s3 + $0x48] sm:$0xf]
        %v835 = vld [vmem:[%s3 + $0x4c] sm:$0xf]
        %v836 = vld [vmem:[%s3 + $0x50] sm:$0xf]
        %v837 = vld [vmem:[%s3 + $0x54] sm:$0xf]
        %v838 = vld [vmem:[%s3 + $0x58] sm:$0xf]
        %v839 = vld [vmem:[%s3 + $0x5c] sm:$0xf]
        %v840 = vld [vmem:[%s3 + $0x60] sm:$0xf]
        %v841 = vld [vmem:[%s3 + $0x64] sm:$0xf]
        %v842 = vld [vmem:[%s3 + $0x68] sm:$0xf]
        %v843 = vld [vmem:[%s3 + $0x6c] sm:$0xf]
        %v844 = vld [vmem:[%s3 + $0x70] sm:$0xf]
        %v845 = vld [vmem:[%s3 + $0x74] sm:$0xf]
        %v846 = vld [vmem:[%s3 + $0x78] sm:$0xf]
        %v847 = vld [vmem:[%s3 + $0x7c] sm:$0xf]
        %v848 = vld [vmem:[%s4] sm:$0x1]
        %v850 = vlaneseq
        %v851 = vshrl.u32 %v850, 7
        %v852 = vsub.s32 0, %v851
        %v853 = vrot.slane %v848, %v852
        %v887 = vunpack.c.l.b16 %v816
        %v888 = vunpack.c.l.b16 %v817
        %v889 = vunpack.c.l.b16 %v818
        %v890 = vunpack.c.l.b16 %v819
        %v891 = vunpack.c.l.b16 %v820
        %v892 = vunpack.c.l.b16 %v821
        %v893 = vunpack.c.l.b16 %v822
        %v894 = vunpack.c.l.b16 %v823
        %v895 = vunpack.c.l.b16 %v824
        %v896 = vunpack.c.l.b16 %v825
        %v897 = vunpack.c.l.b16 %v826
        %v898 = vunpack.c.l.b16 %v827
        %v899 = vunpack.c.l.b16 %v828
        %v900 = vunpack.c.l.b16 %v829
        %v901 = vunpack.c.l.b16 %v830
        %v902 = vunpack.c.l.b16 %v831
        %v903 = vunpack.c.l.b16 %v832
        %v904 = vunpack.c.l.b16 %v833
        %v905 = vunpack.c.l.b16 %v834
        %v906 = vunpack.c.l.b16 %v835
        %v907 = vunpack.c.l.b16 %v836
        %v908 = vunpack.c.l.b16 %v837
        %v909 = vunpack.c.l.b16 %v838
        %v910 = vunpack.c.l.b16 %v839
        %v911 = vunpack.c.l.b16 %v840
        %v912 = vunpack.c.l.b16 %v841
        %v913 = vunpack.c.l.b16 %v842
        %v914 = vunpack.c.l.b16 %v843
        %v915 = vunpack.c.l.b16 %v844
        %v916 = vunpack.c.l.b16 %v845
        %v917 = vunpack.c.l.b16 %v846
        %v918 = vunpack.c.l.b16 %v847
        %v919 = vpack.c.b16 %v888, %v887
        %v920 = vpack.c.b16 %v890, %v889
        %v921 = vpack.c.b16 %v892, %v891
        %v922 = vpack.c.b16 %v894, %v893
        %v923 = vpack.c.b16 %v896, %v895
        %v924 = vpack.c.b16 %v898, %v897
        %v925 = vpack.c.b16 %v900, %v899
        %v926 = vpack.c.b16 %v902, %v901
        %v927 = vpack.c.b16 %v904, %v903
        %v928 = vpack.c.b16 %v906, %v905
        %v929 = vpack.c.b16 %v908, %v907
        %v930 = vpack.c.b16 %v910, %v909
        %v931 = vpack.c.b16 %v912, %v911
        %v932 = vpack.c.b16 %v914, %v913
        %v933 = vpack.c.b16 %v916, %v915
        %v934 = vpack.c.b16 %v918, %v917
        %951 = vmatprep.subr.bf16.mxu0 0
        %952 = vmatpush1.bf16.msra.mxu0 %v919
        %953 = vmatprep.subr.bf16.mxu0 0
        %954 = vmatpush1.bf16.msra.mxu0 %v920
        %955 = vmatprep.subr.bf16.mxu0 0
        %956 = vmatpush1.bf16.msra.mxu0 %v921
        %957 = vmatprep.subr.bf16.mxu0 0
        %958 = vmatpush1.bf16.msra.mxu0 %v922
        %959 = vmatprep.subr.bf16.mxu0 0
        %960 = vmatpush1.bf16.msra.mxu0 %v923
        %961 = vmatprep.subr.bf16.mxu0 0
        %962 = vmatpush1.bf16.msra.mxu0 %v924
        %963 = vmatprep.subr.bf16.mxu0 0
        %964 = vmatpush1.bf16.msra.mxu0 %v925
        %965 = vmatprep.subr.bf16.mxu0 0
        %966 = vmatpush1.bf16.msra.mxu0 %v926
        %967 = vmatprep.subr.bf16.mxu0 0
        %968 = vmatpush1.bf16.msra.mxu0 %v927
        %969 = vmatprep.subr.bf16.mxu0 0
        %970 = vmatpush1.bf16.msra.mxu0 %v928
        %971 = vmatprep.subr.bf16.mxu0 0
        %972 = vmatpush1.bf16.msra.mxu0 %v929
        %973 = vmatprep.subr.bf16.mxu0 0
        %974 = vmatpush1.bf16.msra.mxu0 %v930
        %975 = vmatprep.subr.bf16.mxu0 0
        %976 = vmatpush1.bf16.msra.mxu0 %v931
        %977 = vmatprep.subr.bf16.mxu0 0
        %978 = vmatpush1.bf16.msra.mxu0 %v932
        %979 = vmatprep.subr.bf16.mxu0 0
        %980 = vmatpush1.bf16.msra.mxu0 %v933
        %981 = vmatprep.subr.bf16.mxu0 0
        %982 = vmatpush1.bf16.msra.mxu0 %v934
        %983 = vmatprep.mubr.bf16.mxu0 %v801
        %984 = vmatmul.mubr.bf16.gmra.mrb[0].mxu0 %v800
        %v985 = vpop.f32.mrb[0].mxu0
        %v986 = vadd.f32 %v853, %v985
        %v987 = vpop.f32.mrb[0].mxu0
        %v988 = vpop.f32.mrb[0].mxu0
        %v989 = vadd.f32 %v853, %v988
        %v990 = vpop.f32.mrb[0].mxu0
        %991 = vmatprep.mubr.bf16.mxu0 %v803
        %992 = vmatmul.mubr.bf16.gmra.mrb[0].mxu0 %v802
        %v993 = vpop.f32.mrb[0].mxu0
        %v994 = vadd.f32 %v853, %v993
        %v995 = vpop.f32.mrb[0].mxu0
        %v996 = vpop.f32.mrb[0].mxu0
        %v997 = vadd.f32 %v853, %v996
        %v998 = vpop.f32.mrb[0].mxu0
        %999 = vmatprep.mubr.bf16.mxu0 %v805
        %1000 = vmatmul.mubr.bf16.gmra.mrb[0].mxu0 %v804
        %v1001 = vpop.f32.mrb[0].mxu0
        %v1002 = vadd.f32 %v853, %v1001
        %v1003 = vpop.f32.mrb[0].mxu0
        %v1004 = vpop.f32.mrb[0].mxu0
        %v1005 = vadd.f32 %v853, %v1004
        %v1006 = vpop.f32.mrb[0].mxu0
        %1007 = vmatprep.mubr.bf16.mxu0 %v807
        %1008 = vmatmul.mubr.bf16.gmra.mrb[0].mxu0 %v806
        %v1009 = vpop.f32.mrb[0].mxu0
        %v1010 = vadd.f32 %v853, %v1009
        %v1011 = vpop.f32.mrb[0].mxu0
        %v1012 = vpop.f32.mrb[0].mxu0
        %v1013 = vadd.f32 %v853, %v1012
        %v1014 = vpop.f32.mrb[0].mxu0
        %1015 = vmatprep.mubr.bf16.mxu0 %v809
        %1016 = vmatmul.mubr.bf16.gmra.mrb[0].mxu0 %v808
        %v1017 = vpop.f32.mrb[0].mxu0
        %v1018 = vadd.f32 %v853, %v1017
        %v1019 = vpop.f32.mrb[0].mxu0
        %v1020 = vpop.f32.mrb[0].mxu0
        %v1021 = vadd.f32 %v853, %v1020
        %v1022 = vpop.f32.mrb[0].mxu0
        %1023 = vmatprep.mubr.bf16.mxu0 %v811
        %1024 = vmatmul.mubr.bf16.gmra.mrb[0].mxu0 %v810
        %v1025 = vpop.f32.mrb[0].mxu0
        %v1026 = vadd.f32 %v853, %v1025
        %v1027 = vpop.f32.mrb[0].mxu0
        %v1028 = vpop.f32.mrb[0].mxu0
        %v1029 = vadd.f32 %v853, %v1028
        %v1030 = vpop.f32.mrb[0].mxu0
        %1031 = vmatprep.mubr.bf16.mxu0 %v813
        %1032 = vmatmul.mubr.bf16.gmra.mrb[0].mxu0 %v812
        %v1033 = vpop.f32.mrb[0].mxu0
        %v1034 = vadd.f32 %v853, %v1033
        %v1035 = vpop.f32.mrb[0].mxu0
        %v1036 = vpop.f32.mrb[0].mxu0
        %v1037 = vadd.f32 %v853, %v1036
        %v1038 = vpop.f32.mrb[0].mxu0
        %1039 = vmatprep.mubr.bf16.mxu0 %v815
        %1040 = vmatmul.mubr.bf16.gmra.mrb[0].mxu0 %v814
        %v1041 = vpop.f32.mrb[0].mxu0
        %v1042 = vadd.f32 %v853, %v1041
        %v1043 = vpop.f32.mrb[0].mxu0
        %v1044 = vpop.f32.mrb[0].mxu0
        %v1045 = vadd.f32 %v853, %v1044
        %v1046 = vpop.f32.mrb[0].mxu0
        %1047 = vdwg.mxu0
        %v1048 = vpack.c.bf16 %v989, %v986
        %v1049 = vpack.c.bf16 %v997, %v994
        %v1050 = vpack.c.bf16 %v1005, %v1002
        %v1051 = vpack.c.bf16 %v1013, %v1010
        %v1052 = vpack.c.bf16 %v1021, %v1018
        %v1053 = vpack.c.bf16 %v1029, %v1026
        %v1054 = vpack.c.bf16 %v1037, %v1034
        %v1055 = vpack.c.bf16 %v1045, %v1042
        %v1064 = vunpack.c.l.b16 %v1048
        %v1065 = vunpack.c.h.b16 %v1048
        %v1066 = vunpack.c.l.b16 %v1049
        %v1067 = vunpack.c.h.b16 %v1049
        %v1068 = vunpack.c.l.b16 %v1050
        %v1069 = vunpack.c.h.b16 %v1050
        %v1070 = vunpack.c.l.b16 %v1051
        %v1071 = vunpack.c.h.b16 %v1051
        %v1072 = vunpack.c.l.b16 %v1052
        %v1073 = vunpack.c.h.b16 %v1052
        %v1074 = vunpack.c.l.b16 %v1053
        %v1075 = vunpack.c.h.b16 %v1053
        %v1076 = vunpack.c.l.b16 %v1054
        %v1077 = vunpack.c.h.b16 %v1054
        %v1078 = vunpack.c.l.b16 %v1055
        %v1079 = vunpack.c.h.b16 %v1055
        %v1080 = vpack.c.b16 %v1064, %v1064
        %v1081 = vpack.c.b16 %v1065, %v1065
        %v1082 = vpack.c.b16 %v1066, %v1066
        %v1083 = vpack.c.b16 %v1067, %v1067
        %v1084 = vpack.c.b16 %v1068, %v1068
        %v1085 = vpack.c.b16 %v1069, %v1069
        %v1086 = vpack.c.b16 %v1070, %v1070
        %v1087 = vpack.c.b16 %v1071, %v1071
        %v1088 = vpack.c.b16 %v1072, %v1072
        %v1089 = vpack.c.b16 %v1073, %v1073
        %v1090 = vpack.c.b16 %v1074, %v1074
        %v1091 = vpack.c.b16 %v1075, %v1075
        %v1092 = vpack.c.b16 %v1076, %v1076
        %v1093 = vpack.c.b16 %v1077, %v1077
        %v1094 = vpack.c.b16 %v1078, %v1078
        %v1095 = vpack.c.b16 %v1079, %v1079
        %1112 = vst [vmem:[%s218] sm:$0xf] %v1080
        %1113 = vst [vmem:[%s218 + $0x4] sm:$0xf] %v1081
        %1114 = vst [vmem:[%s218 + $0x8] sm:$0xf] %v1082
        %1115 = vst [vmem:[%s218 + $0xc] sm:$0xf] %v1083
        %1116 = vst [vmem:[%s218 + $0x10] sm:$0xf] %v1084
        %1117 = vst [vmem:[%s218 + $0x14] sm:$0xf] %v1085
        %1118 = vst [vmem:[%s218 + $0x18] sm:$0xf] %v1086
        %1119 = vst [vmem:[%s218 + $0x1c] sm:$0xf] %v1087
        %1120 = vst [vmem:[%s218 + $0x20] sm:$0xf] %v1088
        %1121 = vst [vmem:[%s218 + $0x24] sm:$0xf] %v1089
        %1122 = vst [vmem:[%s218 + $0x28] sm:$0xf] %v1090
        %1123 = vst [vmem:[%s218 + $0x2c] sm:$0xf] %v1091
        %1124 = vst [vmem:[%s218 + $0x30] sm:$0xf] %v1092
        %1125 = vst [vmem:[%s218 + $0x34] sm:$0xf] %v1093
        %1126 = vst [vmem:[%s218 + $0x38] sm:$0xf] %v1094
        %1127 = vst [vmem:[%s218 + $0x3c] sm:$0xf] %v1095
        %s1128 = sand.u32 %s137, 1
        %s1129 = scalar_lea.sflag [#allocation3], %s1128
        %s1130 = sand.u32 %s137, 1
        %s1131 = smul.addr %s1130, 64
        %s1132 = scalar_lea.vmem [#allocation2], %s1131
        // Predicated region
        $region41: #{_lambda_.1} parent=39 // pred_check
          %p1133 = pneg %p147
        $region42: #{_lambda_.1} parent=39 // pred_check_branch
          %1135 = sbr.rel (%p1133) target = $region44
        $region43: #{_lambda_.1} parent=39 // pred_region
          %s1136 = smul.u32 16, %s19
          %s1138 = ssub.s32 1024, 1024
          %1139 = vsyncadd %s1129, %s1138
          %s1140 = smul.addr %s1136, 64
          %s1141 = scalar_lea.hbm %s5, %s1140
          %s1142 = sshll.u32 %s1132, 4
          %s1143 = int_to_ptr.vmem [resolvable:$true] %s1142
          %1148 = dma.vmem_to_hbm [thread:$0]  %s1143, 1024, %s1141, %s1129, 64, 64, 4
        $region44: #{_lambda_.1} parent=39 // pred_fallthru
          _
      $region40: #{_lambda_.1} parent=5 // pred_fallthru
        _
      %p1149 = scmp.le.s32.totalorder 2, %s14
      // Predicated region
      $region45: #{_lambda_.1} parent=5 // pred_check
        %p1150 = pneg %p1149
      $region46: #{_lambda_.1} parent=5 // pred_check_branch
        %1152 = sbr.rel (%p1150) target = $region48
      $region47: #{_lambda_.1} parent=5 // pred_region
        %s1153 = ssub.s32 %s14, 2
        // Predicated region
        $region49: #{_lambda_.1} parent=47 // pred_check
          %p1154 = pneg %p153
        $region50: #{_lambda_.1} parent=47 // pred_check_branch
          %1156 = sbr.rel (%p1154) target = $region52
        $region51: #{_lambda_.1} parent=47 // pred_region
          %s1157 = sand.u32 %s138, 1
          %s1158 = scalar_lea.sflag [#allocation3], %s1157
          %s1159 = sand.u32 %s138, 1
          %s1160 = smul.addr %s1159, 64
          %s1161 = scalar_lea.vmem [#allocation2], %s1160
          %1162 = dma.done %s1158, 1024
        $region52: #{_lambda_.1} parent=47 // pred_fallthru
          _
      $region48: #{_lambda_.1} parent=5 // pred_fallthru
        _
    $region6: #{_lambda_.1} parent=1 // loop_footer
      %s18 = sadd.s32 1, %s14
    $region7: #{_lambda_.1} parent=1 // loop_footer_branch
      %13 = sbr.rel target = $region3
    $region8: #{_lambda_.1} parent=1 // loop_exit
      _
    %1163 = vsyncpa [#allocation3], 1
    %s1164 = scalar_lea.sflag [#allocation3], 1
    %1165 = vsyncpa %s1164, 1

</llo_original>
